<compile_context>
chip_gen: v7x
topology: tpu7x:2x2x1
jax: 0.10.0
libtpu: 0.0.40
codegen_flags: <defaults>
</compile_context>

<pallas_src>
import jax
import jax.numpy as jnp
from jax.experimental import pallas as pl
from jax.experimental.pallas import tpu as pltpu

KH = KW = 3  # nn.Conv2d(1, 1, 3): 3x3 kernel, stride 1, no padding, with bias


def conv2d_1ch_kernel(w_ref, b_ref, x_ref, o_ref):
    # w_ref: SMEM (9,) flattened 3x3 weights
    # b_ref: SMEM (1,) bias
    # x_ref: VMEM (Nb, H, W)  batch chunk of input planes
    # o_ref: VMEM (Nb, OH, OW) batch chunk of output planes
    _, OH, OW = o_ref.shape
    x = x_ref[...]

    # Load weights/bias from SMEM into scalars once (single sld each; avoids
    # repeated scalar->vreg broadcasts inside the tap loop).
    w = [w_ref[i] for i in range(KH * KW)]
    b = b_ref[0]

    # Hoist the lane-shifted column views: only 3 lane shifts total.
    x0 = x[:, :, 0:OW]
    x1 = x[:, :, 1:1 + OW]
    x2 = x[:, :, 2:2 + OW]
    cols = (x0, x1, x2)

    # ki = 0 row initializes the accumulator (no zeros init + extra add).
    acc = w[0] * x0[:, 0:OH, :]
    acc = acc + w[1] * x1[:, 0:OH, :]
    acc = acc + w[2] * x2[:, 0:OH, :]
    # Remaining rows: sublane-only shifts of the already-shifted columns.
    for ki in range(1, KH):
        for kj in range(KW):
            acc = acc + w[ki * KW + kj] * cols[kj][:, ki:ki + OH, :]

    o_ref[...] = acc + b


def net_forward(x_nchw, weight, bias, *, vmem_budget_bytes=8 * 1024 * 1024):
    """Equivalent of Net.forward: y = Conv2d(1, 1, 3)(x), x in NCHW."""
    N, C, H, W = x_nchw.shape
    assert C == 1, "Net uses a single input channel"
    OH, OW = H - KH + 1, W - KW + 1

    x = x_nchw.reshape(N, H, W).astype(jnp.float32)
    w_flat = weight.reshape(KH * KW).astype(jnp.float32)
    b = bias.reshape(1).astype(jnp.float32)

    # Pick the largest batch chunk whose (double-buffered) in+out blocks fit a
    # conservative VMEM budget (guards v7x's smaller VMEM); for small inputs
    # this collapses to a single grid step covering the whole batch.
    per_image_bytes = 4 * (H * W + OH * OW) * 2  # f32, in+out, double-buffered
    nb = max(1, min(N, vmem_budget_bytes // max(per_image_bytes, 1)))
    while N % nb:  # keep index maps trivial: nb must divide N
        nb -= 1
    steps = N // nb

    out = pl.pallas_call(
        conv2d_1ch_kernel,
        out_shape=jax.ShapeDtypeStruct((N, OH, OW), jnp.float32),
        grid=(steps,),
        in_specs=[
            pl.BlockSpec(memory_space=pltpu.MemorySpace.SMEM),  # weights
            pl.BlockSpec(memory_space=pltpu.MemorySpace.SMEM),  # bias
            pl.BlockSpec((nb, H, W), lambda i: (i, 0, 0)),      # batch chunk in
        ],
        out_specs=pl.BlockSpec((nb, OH, OW), lambda i: (i, 0, 0)),
        compiler_params=pltpu.CompilerParams(
            dimension_semantics=("parallel",),  # shards chunks across v7x TCs
        ),
    )(w_flat, b, x)

    return out.reshape(N, 1, OH, OW)


if __name__ == "__main__":
    key = jax.random.PRNGKey(0)
    kx, kw, kb = jax.random.split(key, 3)

    # deterministic synthetic parameters (same shapes as nn.Conv2d(1, 1, 3))
    fan_in = 1 * KH * KW
    bound = 1.0 / (fan_in ** 0.5)
    weight = jax.random.uniform(kw, (1, 1, KH, KW), jnp.float32, -bound, bound)
    bias = jax.random.uniform(kb, (1,), jnp.float32, -bound, bound)

    # small NCHW input consistent with the module (in_channels = 1)
    x = jax.random.normal(kx, (2, 1, 16, 16), jnp.float32)

    y = net_forward(x, weight, bias)
    jax.block_until_ready(y)

    # quiet correctness check against XLA's conv
    y_ref = jax.lax.conv_general_dilated(
        x, weight, window_strides=(1, 1), padding="VALID",
        dimension_numbers=("NCHW", "OIHW", "NCHW"),
    ) + bias.reshape(1, 1, 1, 1)
    assert y.shape == (2, 1, 14, 14)
    assert jnp.allclose(y, y_ref, atol=1e-5, rtol=1e-5)

    print("KERNEL_OK")
</pallas_src>

<mosaic_0001>
module attributes {stable_mosaic.version = 11 : i64} {
  func.func @conv2d_1ch_kernel(%arg0: i32, %arg1: memref<9xf32, #tpu.memory_space<smem>>, %arg2: memref<1xf32, #tpu.memory_space<smem>>, %arg3: memref<2x16x16xf32, #tpu.memory_space<vmem>>, %arg4: memref<2x14x14xf32, #tpu.memory_space<vmem>>) attributes {dimension_semantics = [#tpu.dimension_semantics<parallel>], iteration_bounds = array<i64: 1>, scalar_prefetch = 0 : i64, scratch_operands = 0 : i64, tpu.core_type = #tpu.core_type<tc>, window_params = [{transform_indices = @transform_0, window_bounds = array<i64: 9>}, {transform_indices = @transform_1, window_bounds = array<i64: 1>}, {transform_indices = @transform_2, window_bounds = array<i64: 2, 16, 16>}, {transform_indices = @transform_3, window_bounds = array<i64: 2, 14, 14>}]} {
    %c0 = arith.constant 0 : index
    %c0_0 = arith.constant 0 : index
    %c0_1 = arith.constant 0 : index
    %0 = vector.load %arg3[%c0, %c0_0, %c0_1] : memref<2x16x16xf32, #tpu.memory_space<vmem>>, vector<2x16x16xf32>
    %c0_2 = arith.constant 0 : index
    %1 = memref.load %arg1[%c0_2] : memref<9xf32, #tpu.memory_space<smem>>
    %c1 = arith.constant 1 : index
    %2 = memref.load %arg1[%c1] : memref<9xf32, #tpu.memory_space<smem>>
    %c2 = arith.constant 2 : index
    %3 = memref.load %arg1[%c2] : memref<9xf32, #tpu.memory_space<smem>>
    %c3 = arith.constant 3 : index
    %4 = memref.load %arg1[%c3] : memref<9xf32, #tpu.memory_space<smem>>
    %c4 = arith.constant 4 : index
    %5 = memref.load %arg1[%c4] : memref<9xf32, #tpu.memory_space<smem>>
    %c5 = arith.constant 5 : index
    %6 = memref.load %arg1[%c5] : memref<9xf32, #tpu.memory_space<smem>>
    %c6 = arith.constant 6 : index
    %7 = memref.load %arg1[%c6] : memref<9xf32, #tpu.memory_space<smem>>
    %c7 = arith.constant 7 : index
    %8 = memref.load %arg1[%c7] : memref<9xf32, #tpu.memory_space<smem>>
    %c8 = arith.constant 8 : index
    %9 = memref.load %arg1[%c8] : memref<9xf32, #tpu.memory_space<smem>>
    %c0_3 = arith.constant 0 : index
    %10 = memref.load %arg2[%c0_3] : memref<1xf32, #tpu.memory_space<smem>>
    %11 = vector.extract_strided_slice %0 {offsets = [0, 0, 0], sizes = [2, 16, 14], strides = [1, 1, 1]} : vector<2x16x16xf32> to vector<2x16x14xf32>
    %12 = vector.extract_strided_slice %0 {offsets = [0, 0, 1], sizes = [2, 16, 14], strides = [1, 1, 1]} : vector<2x16x16xf32> to vector<2x16x14xf32>
    %13 = vector.extract_strided_slice %0 {offsets = [0, 0, 2], sizes = [2, 16, 14], strides = [1, 1, 1]} : vector<2x16x16xf32> to vector<2x16x14xf32>
    %14 = vector.extract_strided_slice %11 {offsets = [0, 0, 0], sizes = [2, 14, 14], strides = [1, 1, 1]} : vector<2x16x14xf32> to vector<2x14x14xf32>
    %15 = vector.broadcast %1 : f32 to vector<2x14x14xf32>
    %16 = arith.mulf %15, %14 : vector<2x14x14xf32>
    %17 = vector.extract_strided_slice %12 {offsets = [0, 0, 0], sizes = [2, 14, 14], strides = [1, 1, 1]} : vector<2x16x14xf32> to vector<2x14x14xf32>
    %18 = vector.broadcast %2 : f32 to vector<2x14x14xf32>
    %19 = arith.mulf %18, %17 : vector<2x14x14xf32>
    %20 = arith.addf %16, %19 : vector<2x14x14xf32>
    %21 = vector.extract_strided_slice %13 {offsets = [0, 0, 0], sizes = [2, 14, 14], strides = [1, 1, 1]} : vector<2x16x14xf32> to vector<2x14x14xf32>
    %22 = vector.broadcast %3 : f32 to vector<2x14x14xf32>
    %23 = arith.mulf %22, %21 : vector<2x14x14xf32>
    %24 = arith.addf %20, %23 : vector<2x14x14xf32>
    %25 = vector.extract_strided_slice %11 {offsets = [0, 1, 0], sizes = [2, 14, 14], strides = [1, 1, 1]} : vector<2x16x14xf32> to vector<2x14x14xf32>
    %26 = vector.broadcast %4 : f32 to vector<2x14x14xf32>
    %27 = arith.mulf %26, %25 : vector<2x14x14xf32>
    %28 = arith.addf %24, %27 : vector<2x14x14xf32>
    %29 = vector.extract_strided_slice %12 {offsets = [0, 1, 0], sizes = [2, 14, 14], strides = [1, 1, 1]} : vector<2x16x14xf32> to vector<2x14x14xf32>
    %30 = vector.broadcast %5 : f32 to vector<2x14x14xf32>
    %31 = arith.mulf %30, %29 : vector<2x14x14xf32>
    %32 = arith.addf %28, %31 : vector<2x14x14xf32>
    %33 = vector.extract_strided_slice %13 {offsets = [0, 1, 0], sizes = [2, 14, 14], strides = [1, 1, 1]} : vector<2x16x14xf32> to vector<2x14x14xf32>
    %34 = vector.broadcast %6 : f32 to vector<2x14x14xf32>
    %35 = arith.mulf %34, %33 : vector<2x14x14xf32>
    %36 = arith.addf %32, %35 : vector<2x14x14xf32>
    %37 = vector.extract_strided_slice %11 {offsets = [0, 2, 0], sizes = [2, 14, 14], strides = [1, 1, 1]} : vector<2x16x14xf32> to vector<2x14x14xf32>
    %38 = vector.broadcast %7 : f32 to vector<2x14x14xf32>
    %39 = arith.mulf %38, %37 : vector<2x14x14xf32>
    %40 = arith.addf %36, %39 : vector<2x14x14xf32>
    %41 = vector.extract_strided_slice %12 {offsets = [0, 2, 0], sizes = [2, 14, 14], strides = [1, 1, 1]} : vector<2x16x14xf32> to vector<2x14x14xf32>
    %42 = vector.broadcast %8 : f32 to vector<2x14x14xf32>
    %43 = arith.mulf %42, %41 : vector<2x14x14xf32>
    %44 = arith.addf %40, %43 : vector<2x14x14xf32>
    %45 = vector.extract_strided_slice %13 {offsets = [0, 2, 0], sizes = [2, 14, 14], strides = [1, 1, 1]} : vector<2x16x14xf32> to vector<2x14x14xf32>
    %46 = vector.broadcast %9 : f32 to vector<2x14x14xf32>
    %47 = arith.mulf %46, %45 : vector<2x14x14xf32>
    %48 = arith.addf %44, %47 : vector<2x14x14xf32>
    %49 = vector.broadcast %10 : f32 to vector<2x14x14xf32>
    %50 = arith.addf %48, %49 : vector<2x14x14xf32>
    %c0_4 = arith.constant 0 : index
    %c0_5 = arith.constant 0 : index
    %c0_6 = arith.constant 0 : index
    %51 = vector.load %arg4[%c0_4, %c0_5, %c0_6] : memref<2x14x14xf32, #tpu.memory_space<vmem>>, vector<2x14x14xf32>
    tpu.vector_store %arg4[%c0_4, %c0_5, %c0_6], %50 {strides = array<i32>} : memref<2x14x14xf32, #tpu.memory_space<vmem>>, vector<2x14x14xf32>,
    return
  }
  func.func @transform_0(%arg0: i32) -> i32 {
    %c0_i32 = arith.constant 0 : i32
    %c0_i32_0 = arith.constant 0 : i32
    return %c0_i32 : i32
  }
  func.func @transform_1(%arg0: i32) -> i32 {
    %c0_i32 = arith.constant 0 : i32
    %c0_i32_0 = arith.constant 0 : i32
    return %c0_i32 : i32
  }
  func.func @transform_2(%arg0: i32) -> (i32, i32, i32) {
    %c0_i32 = arith.constant 0 : i32
    %c0_i32_0 = arith.constant 0 : i32
    %c0_i32_1 = arith.constant 0 : i32
    return %arg0, %c0_i32, %c0_i32_0 : i32, i32, i32
  }
  func.func @transform_3(%arg0: i32) -> (i32, i32, i32) {
    %c0_i32 = arith.constant 0 : i32
    %c0_i32_0 = arith.constant 0 : i32
    %c0_i32_1 = arith.constant 0 : i32
    return %arg0, %c0_i32, %c0_i32_0 : i32, i32, i32
  }
}

</mosaic_0001>

<llo_original>
// kernel: tpu_custom_call.1
$region0: #{tpu_custom_call.1}
  #allocation0 [shape = 'u32[]', space=smem, size = 0x4, offset = 0x4, fixed_abs, tag = 'smem constant byte address 0x4 - core index']
  #allocation1 [shape = 'u32[144,128]{1,0:T(1,128)}', space=vmem, size = 0x12000, scoped, tag = 'internal scratch']
  #allocation2 [shape = 'f32[1]{0:T(128)S(6)}', space=smem, size = 0x200, scoped, tag = 'scoped memory for tpu_custom_call.1']
  %s0 = inlined_call_operand.vmem [shape: f32[9], index: 0, kind: input, shape index: {}]
  %s1 = inlined_call_operand.<no memory space> [shape: f32[1], index: 1, kind: input, shape index: {}]
  %s2 = inlined_call_operand.hbm [shape: f32[2,16,16], index: 2, kind: input, shape index: {}]
  %s3 = inlined_call_operand.vmem [shape: f32[2,14,14], index: 3, kind: output, shape index: {}]
  %s4 = sld [smem:[#allocation0]]
  $region30: #{tpu_custom_call.1} parent=0
    _
  %s6 = ssub.s32 1, %s4
  %s7 = scalar_select 0, %s6, %s4
  %8 = sst [smem:[#allocation2]] %s1
  $region1: #{tpu_custom_call.1} parent=0
    #allocation3 [shape = 'u8[512]{0}', space=smem, size = 0x200, scoped, tag = 'input window, operand 0, single buffered']
    #allocation4 [shape = 's32[1]{0}', space=sflag, size = 0x4, scoped, tag = 'scoped memory for tpu_custom_call.1']
    #allocation5 [shape = 's32[1]{0}', space=sflag, size = 0x4, scoped, tag = 'scoped memory for tpu_custom_call.1']
    #allocation6 [shape = 'u8[16384]{0}', space=vmem, size = 0x4000, scoped, tag = 'input window, operand 2, single buffered']
    %9 = vsyncpa [#allocation5], 0
    %10 = vsyncpa [#allocation4], 0
    // Predicated region
    $region2: #{tpu_custom_call.1} parent=1 // pred_check
      _
    $region3: #{tpu_custom_call.1} parent=1 // pred_check_branch
      %12 = sbr.rel (0) target = $region5
    $region4: #{tpu_custom_call.1} parent=1 // pred_region
      %s14 = ssub.s32 16, 16
      %15 = vsyncadd [#allocation5], %s14
      %s17 = sshll.u32 %s0, 4
      %s18 = int_to_ptr.vmem [resolvable:$true] %s17
      %20 = dma.vmem_to_smem %s18, 16, [#allocation3], [#allocation5]
    $region5: #{tpu_custom_call.1} parent=1 // pred_fallthru
      _
    // Predicated region
    $region6: #{tpu_custom_call.1} parent=1 // pred_check
      _
    $region7: #{tpu_custom_call.1} parent=1 // pred_check_branch
      %22 = sbr.rel (0) target = $region9
    $region8: #{tpu_custom_call.1} parent=1 // pred_region
      _
    $region9: #{tpu_custom_call.1} parent=1 // pred_fallthru
      _
    // Predicated region
    $region10: #{tpu_custom_call.1} parent=1 // pred_check
      _
    $region11: #{tpu_custom_call.1} parent=1 // pred_check_branch
      %24 = sbr.rel (0) target = $region13
    $region12: #{tpu_custom_call.1} parent=1 // pred_region
      %s26 = ssub.s32 512, 512
      %27 = vsyncadd [#allocation4], %s26
      %s28 = sshll.u32 [#allocation6], 4
      %s29 = int_to_ptr.vmem [resolvable:$true] %s28
      %34 = dma.hbm_to_vmem [thread:$0]  %s2, 512, %s29, [#allocation4], 128, 128, 8
    $region13: #{tpu_custom_call.1} parent=1 // pred_fallthru
      _
    // Predicated region
    $region14: #{tpu_custom_call.1} parent=1 // pred_check
      _
    $region15: #{tpu_custom_call.1} parent=1 // pred_check_branch
      %36 = sbr.rel (0) target = $region17
    $region16: #{tpu_custom_call.1} parent=1 // pred_region
      %37 = dma.done [#allocation5], 16
    $region17: #{tpu_custom_call.1} parent=1 // pred_fallthru
      _
    // Predicated region
    $region18: #{tpu_custom_call.1} parent=1 // pred_check
      _
    $region19: #{tpu_custom_call.1} parent=1 // pred_check_branch
      %39 = sbr.rel (0) target = $region21
    $region20: #{tpu_custom_call.1} parent=1 // pred_region
      %40 = dma.done [#allocation4], 512
    $region21: #{tpu_custom_call.1} parent=1 // pred_fallthru
      _
    %41 = sfence
    %v42 = vld [vmem:[#allocation6] sm:$0xff]
    %v43 = vld [vmem:[#allocation6 + $0x8] sm:$0xff]
    %v44 = vld [vmem:[#allocation6 + $0x10] sm:$0xff]
    %v45 = vld [vmem:[#allocation6 + $0x18] sm:$0xff]
    %s46 = sld [smem:[#allocation3]]
    %s47 = sld [smem:[#allocation3 + $0x1]]
    %s48 = sld [smem:[#allocation3 + $0x2]]
    %s49 = sld [smem:[#allocation3 + $0x3]]
    %s50 = sld [smem:[#allocation3 + $0x4]]
    %s51 = sld [smem:[#allocation3 + $0x5]]
    %s52 = sld [smem:[#allocation3 + $0x6]]
    %s53 = sld [smem:[#allocation3 + $0x7]]
    %s54 = sld [smem:[#allocation3 + $0x8]]
    %s55 = sld [smem:[#allocation2]]
    %v56 = vstv %s46
    %v57 = vmul.f32 %v56, %v42
    %v58 = vmul.f32 %v56, %v43
    %v59 = vmul.f32 %v56, %v44
    %v60 = vmul.f32 %v56, %v45
    %v61 = vstv %s47
    %v62 = vmul.f32 %v61, %v42
    %v63 = vmul.f32 %v61, %v43
    %v64 = vmul.f32 %v61, %v44
    %v65 = vmul.f32 %v61, %v45
    %70 = vrot.lane.b32.xlu0 %v62, 127
    %v71 = vpop.permute.xlu0 %70
    %72 = vrot.lane.b32.xlu0 %v63, 127
    %v73 = vpop.permute.xlu0 %72
    %74 = vrot.lane.b32.xlu0 %v64, 127
    %v75 = vpop.permute.xlu0 %74
    %76 = vrot.lane.b32.xlu0 %v65, 127
    %v77 = vpop.permute.xlu0 %76
    %v82 = vadd.f32 %v57, %v71
    %v83 = vadd.f32 %v58, %v73
    %v84 = vadd.f32 %v59, %v75
    %v85 = vadd.f32 %v60, %v77
    %v86 = vstv %s48
    %v87 = vmul.f32 %v86, %v42
    %v88 = vmul.f32 %v86, %v43
    %v89 = vmul.f32 %v86, %v44
    %v90 = vmul.f32 %v86, %v45
    %95 = vrot.lane.b32.xlu0 %v87, 126
    %v96 = vpop.permute.xlu0 %95
    %97 = vrot.lane.b32.xlu0 %v88, 126
    %v98 = vpop.permute.xlu0 %97
    %99 = vrot.lane.b32.xlu0 %v89, 126
    %v100 = vpop.permute.xlu0 %99
    %101 = vrot.lane.b32.xlu0 %v90, 126
    %v102 = vpop.permute.xlu0 %101
    %v107 = vadd.f32 %v82, %v96
    %v108 = vadd.f32 %v83, %v98
    %v109 = vadd.f32 %v84, %v100
    %v110 = vadd.f32 %v85, %v102
    %v111 = vstv %s49
    %v112 = vmul.f32 %v111, %v42
    %v113 = vmul.f32 %v111, %v43
    %v114 = vmul.f32 %v111, %v44
    %v115 = vmul.f32 %v111, %v45
    %vm120 = vcmask 1046528
    %v121 = vrot.slane %v112, 1
    %v122 = vrot.slane %v113, 1
    %v123 = vsel %vm120, %v121, %v122
    %v124 = vrot.slane %v114, 1
    %v125 = vrot.slane %v115, 1
    %v126 = vsel %vm120, %v124, %v125
    %v131 = vadd.f32 %v107, %v123
    %v132 = vadd.f32 %v108, %v122
    %v133 = vadd.f32 %v109, %v126
    %v134 = vadd.f32 %v110, %v125
    %v135 = vstv %s50
    %v136 = vmul.f32 %v135, %v42
    %v137 = vmul.f32 %v135, %v43
    %v138 = vmul.f32 %v135, %v44
    %v139 = vmul.f32 %v135, %v45
    %v144 = vrot.slane %v136, 1
    %v145 = vrot.slane %v137, 1
    %v146 = vsel %vm120, %v144, %v145
    %v147 = vrot.slane %v138, 1
    %v148 = vrot.slane %v139, 1
    %v149 = vsel %vm120, %v147, %v148
    %150 = vrot.lane.b32.xlu0 %v146, 127
    %v151 = vpop.permute.xlu0 %150
    %152 = vrot.lane.b32.xlu0 %v145, 127
    %v153 = vpop.permute.xlu0 %152
    %154 = vrot.lane.b32.xlu0 %v149, 127
    %v155 = vpop.permute.xlu0 %154
    %156 = vrot.lane.b32.xlu0 %v148, 127
    %v157 = vpop.permute.xlu0 %156
    %v162 = vadd.f32 %v131, %v151
    %v163 = vadd.f32 %v132, %v153
    %v164 = vadd.f32 %v133, %v155
    %v165 = vadd.f32 %v134, %v157
    %v166 = vstv %s51
    %v167 = vmul.f32 %v166, %v42
    %v168 = vmul.f32 %v166, %v43
    %v169 = vmul.f32 %v166, %v44
    %v170 = vmul.f32 %v166, %v45
    %v175 = vrot.slane %v167, 1
    %v176 = vrot.slane %v168, 1
    %v177 = vsel %vm120, %v175, %v176
    %v178 = vrot.slane %v169, 1
    %v179 = vrot.slane %v170, 1
    %v180 = vsel %vm120, %v178, %v179
    %181 = vrot.lane.b32.xlu0 %v177, 126
    %v182 = vpop.permute.xlu0 %181
    %183 = vrot.lane.b32.xlu0 %v176, 126
    %v184 = vpop.permute.xlu0 %183
    %185 = vrot.lane.b32.xlu0 %v180, 126
    %v186 = vpop.permute.xlu0 %185
    %187 = vrot.lane.b32.xlu0 %v179, 126
    %v188 = vpop.permute.xlu0 %187
    %v193 = vadd.f32 %v162, %v182
    %v194 = vadd.f32 %v163, %v184
    %v195 = vadd.f32 %v164, %v186
    %v196 = vadd.f32 %v165, %v188
    %v197 = vstv %s52
    %v198 = vmul.f32 %v197, %v42
    %v199 = vmul.f32 %v197, %v43
    %v200 = vmul.f32 %v197, %v44
    %v201 = vmul.f32 %v197, %v45
    %vm206 = vcmask 1045504
    %v207 = vrot.slane %v198, 2
    %v208 = vrot.slane %v199, 2
    %v209 = vsel %vm206, %v207, %v208
    %v210 = vrot.slane %v200, 2
    %v211 = vrot.slane %v201, 2
    %v212 = vsel %vm206, %v210, %v211
    %v217 = vadd.f32 %v193, %v209
    %v218 = vadd.f32 %v194, %v208
    %v219 = vadd.f32 %v195, %v212
    %v220 = vadd.f32 %v196, %v211
    %v221 = vstv %s53
    %v222 = vmul.f32 %v221, %v42
    %v223 = vmul.f32 %v221, %v43
    %v224 = vmul.f32 %v221, %v44
    %v225 = vmul.f32 %v221, %v45
    %v230 = vrot.slane %v222, 2
    %v231 = vrot.slane %v223, 2
    %v232 = vsel %vm206, %v230, %v231
    %v233 = vrot.slane %v224, 2
    %v234 = vrot.slane %v225, 2
    %v235 = vsel %vm206, %v233, %v234
    %236 = vrot.lane.b32.xlu0 %v232, 127
    %v237 = vpop.permute.xlu0 %236
    %238 = vrot.lane.b32.xlu0 %v231, 127
    %v239 = vpop.permute.xlu0 %238
    %240 = vrot.lane.b32.xlu0 %v235, 127
    %v241 = vpop.permute.xlu0 %240
    %242 = vrot.lane.b32.xlu0 %v234, 127
    %v243 = vpop.permute.xlu0 %242
    %v248 = vadd.f32 %v217, %v237
    %v249 = vadd.f32 %v218, %v239
    %v250 = vadd.f32 %v219, %v241
    %v251 = vadd.f32 %v220, %v243
    %v252 = vstv %s54
    %v253 = vmul.f32 %v252, %v42
    %v254 = vmul.f32 %v252, %v43
    %v255 = vmul.f32 %v252, %v44
    %v256 = vmul.f32 %v252, %v45
    %v261 = vrot.slane %v253, 2
    %v262 = vrot.slane %v254, 2
    %v263 = vsel %vm206, %v261, %v262
    %v264 = vrot.slane %v255, 2
    %v265 = vrot.slane %v256, 2
    %v266 = vsel %vm206, %v264, %v265
    %267 = vrot.lane.b32.xlu0 %v263, 126
    %v268 = vpop.permute.xlu0 %267
    %269 = vrot.lane.b32.xlu0 %v262, 126
    %v270 = vpop.permute.xlu0 %269
    %271 = vrot.lane.b32.xlu0 %v266, 126
    %v272 = vpop.permute.xlu0 %271
    %273 = vrot.lane.b32.xlu0 %v265, 126
    %v274 = vpop.permute.xlu0 %273
    %v279 = vadd.f32 %v248, %v268
    %v280 = vadd.f32 %v249, %v270
    %v281 = vadd.f32 %v250, %v272
    %v282 = vadd.f32 %v251, %v274
    %v283 = vstv %s55
    %v284 = vadd.f32 %v279, %v283
    %v285 = vadd.f32 %v280, %v283
    %v286 = vadd.f32 %v281, %v283
    %v287 = vadd.f32 %v282, %v283
    %vm288 = vcmask 113664
    %289 = vst.msk [vmem:[%s3] sm:$0xff] %vm288, %v284
    %vm290 = vcmask 111616
    %291 = vst.msk [vmem:[%s3 + $0x8] sm:$0x3f] %vm290, %v285
    %292 = vst.msk [vmem:[%s3 + $0x10] sm:$0xff] %vm288, %v286
    %293 = vst.msk [vmem:[%s3 + $0x18] sm:$0x3f] %vm290, %v287
    // Predicated region
    $region22: #{tpu_custom_call.1} parent=1 // pred_check
      _
    $region23: #{tpu_custom_call.1} parent=1 // pred_check_branch
      %295 = sbr.rel (0) target = $region25
    $region24: #{tpu_custom_call.1} parent=1 // pred_region
      _
    $region25: #{tpu_custom_call.1} parent=1 // pred_fallthru
      _
    // Predicated region
    $region26: #{tpu_custom_call.1} parent=1 // pred_check
      _
    $region27: #{tpu_custom_call.1} parent=1 // pred_check_branch
      %297 = sbr.rel (0) target = $region29
    $region28: #{tpu_custom_call.1} parent=1 // pred_region
      _
    $region29: #{tpu_custom_call.1} parent=1 // pred_fallthru
      _
    %298 = vsyncpa [#allocation4], 1
    %299 = vsyncpa [#allocation5], 1

</llo_original>
